<compile_context>
chip_gen: v7x
topology: tpu7x:2x2x1
jax: 0.10.0
libtpu: 0.0.40
codegen_flags: <defaults>
</compile_context>

<pallas_src>
import functools

import jax
import jax.numpy as jnp
from jax import lax
from jax.experimental import pallas as pl
from jax.experimental.pallas import tpu as pltpu

LANES = 128
SUBLANES = 8
BLOCK_BYTE_BUDGET = 4 * 1024 * 1024   # ~4 MiB per input block (perf review)


def _hinge_kernel(o_ref, t_ref, out_ref, *, rows_valid, row_tile, need_mask):
    i = pl.program_id(0)

    @pl.when(i == 0)
    def _():
        out_ref[...] = jnp.zeros_like(out_ref)

    o = o_ref[...].astype(jnp.float32)
    t = t_ref[...].astype(jnp.float32)
    h = jnp.maximum(1.0 - o * t, 0.0)                    # (row_tile, LANES) f32

    def accumulate(x):
        # vreg-shaped partial sums: leading-axis reduce = pure VPU adds.
        out_ref[...] += x.reshape(row_tile // SUBLANES, SUBLANES, LANES).sum(axis=0)

    if need_mask:
        # Only the final (partial) row tile needs masking; gate the mask work
        # so iota / compare / select never run on fully-valid tiles.
        is_partial = (i + 1) * row_tile > rows_valid

        @pl.when(jnp.logical_not(is_partial))
        def _():
            accumulate(h)

        @pl.when(is_partial)
        def _():
            # Row-granular validity from a (row_tile, 1) iota: no
            # (row_tile, 128) int32 intermediate materializes.  jnp.where also
            # squashes garbage/NaN read from the out-of-bounds part of the
            # partial edge block.
            row = lax.broadcasted_iota(jnp.int32, (row_tile, 1), 0)
            valid = (i * row_tile + row) < rows_valid
            accumulate(jnp.where(valid, h, 0.0))
    else:
        accumulate(h)


def _sublane_pack(*dtypes):
    # Sublane packing of the narrowest dtype: f32 -> 8, bf16 -> 16, int8 -> 32.
    min_itemsize = min(jnp.dtype(d).itemsize for d in dtypes)
    return SUBLANES * max(1, 4 // min_itemsize)


def hinge_loss(output, target, *, block_byte_budget=BLOCK_BYTE_BUDGET):
    """mean(relu(1 - output * target)) computed in a Pallas TPU kernel."""
    assert output.shape == target.shape
    n_valid = output.size

    o_flat = output.reshape(-1)   # free reshape of a contiguous tensor
    t_flat = target.reshape(-1)

    pack = _sublane_pack(o_flat.dtype, t_flat.dtype)
    granule = pack * LANES
    n_aligned = (n_valid // granule) * granule
    rows = n_aligned // LANES

    # Sub-granule ragged tail (< pack*128 elements): reduce with plain jnp on a
    # tiny slice instead of padding / copying the full tensors.
    tail_sum = jnp.float32(0.0)
    if n_aligned != n_valid:
        o_tail = o_flat[n_aligned:].astype(jnp.float32)
        t_tail = t_flat[n_aligned:].astype(jnp.float32)
        tail_sum = jnp.sum(jnp.maximum(1.0 - o_tail * t_tail, 0.0))

    if rows == 0:
        # Degenerate tiny input (< pack*128 elements): tail already covers it.
        return tail_sum / jnp.float32(n_valid)

    if n_aligned != n_valid:
        # TODO(synk): XLA materializes this prefix slice (one extra HBM pass);
        # only hit when numel % (pack*128) != 0.
        o_flat = o_flat[:n_aligned]
        t_flat = t_flat[:n_aligned]

    o2 = o_flat.reshape(rows, LANES)
    t2 = t_flat.reshape(rows, LANES)

    # Byte-budgeted row tile (~4 MiB per input block), rounded to the dtype's
    # sublane packing and clamped to the actual row count.
    max_itemsize = max(o2.dtype.itemsize, t2.dtype.itemsize)
    row_tile = block_byte_budget // (LANES * max_itemsize)
    if row_tile >= rows:
        row_tile = rows                        # single full-extent block
    else:
        row_tile = max(pack, (row_tile // pack) * pack)

    n_tiles = pl.cdiv(rows, row_tile)
    need_mask = (rows % row_tile) != 0         # only the last tile can be partial

    kernel = functools.partial(
        _hinge_kernel, rows_valid=rows, row_tile=row_tile, need_mask=need_mask)

    # Double-buffered working set (2 inputs x 2 buffers) plus headroom: stays
    # well under v7x's 64 MiB physical VMEM, above v5e's 16 MiB scoped default.
    block_bytes = row_tile * LANES * (o2.dtype.itemsize + t2.dtype.itemsize)
    vmem_limit = int(min(2 * block_bytes + (8 << 20), 48 << 20))

    partials = pl.pallas_call(
        kernel,
        out_shape=jax.ShapeDtypeStruct((SUBLANES, LANES), jnp.float32),
        grid_spec=pltpu.PrefetchScalarGridSpec(
            num_scalar_prefetch=0,
            grid=(n_tiles,),
            in_specs=[
                pl.BlockSpec((row_tile, LANES), lambda i: (i, 0)),
                pl.BlockSpec((row_tile, LANES), lambda i: (i, 0)),
            ],
            # Resident accumulator block across the (arbitrary) tile axis.
            out_specs=pl.BlockSpec((SUBLANES, LANES), lambda i: (0, 0)),
        ),
        compiler_params=pltpu.CompilerParams(
            dimension_semantics=("arbitrary",),
            vmem_limit_bytes=vmem_limit,
        ),
    )(o2, t2)

    # Single tiny cross-lane reduction (8x128 f32) + mean normalization.
    return (jnp.sum(partials) + tail_sum) / jnp.float32(n_valid)


def hinge_loss_ref(output, target):
    o = output.astype(jnp.float32)
    t = target.astype(jnp.float32)
    return jnp.mean(jnp.maximum(1.0 - o * t, 0.0))


if __name__ == "__main__":
    key = jax.random.PRNGKey(0)
    k1, k2, k3, k4 = jax.random.split(key, 4)

    # Primary case: small NCHW tensors (HingeLoss itself is shape-agnostic),
    # fully aligned fast path (no mask, no tail).
    shape = (2, 4, 16, 16)
    output = jax.random.normal(k1, shape, dtype=jnp.float32)
    # targets in {-1, +1} as typical for a hinge/GAN discriminator loss
    target = jnp.sign(jax.random.normal(k2, shape, dtype=jnp.float32))
    target = jnp.where(target == 0, 1.0, target)

    loss = hinge_loss(output, target)
    jax.block_until_ready(loss)
    ref = hinge_loss_ref(output, target)
    assert jnp.allclose(loss, ref, rtol=1e-5, atol=1e-6), (loss, ref)

    # Secondary case: ragged size + tiny tile budget to exercise multi-tile
    # accumulation, the pl.when-gated partial-tile mask and the jnp tail path.
    shape2 = (2, 4, 30, 40)
    output2 = jax.random.normal(k3, shape2, dtype=jnp.float32)
    target2 = jnp.sign(jax.random.normal(k4, shape2, dtype=jnp.float32))
    target2 = jnp.where(target2 == 0, 1.0, target2)

    loss2 = hinge_loss(output2, target2, block_byte_budget=8 * 1024)
    jax.block_until_ready(loss2)
    ref2 = hinge_loss_ref(output2, target2)
    assert jnp.allclose(loss2, ref2, rtol=1e-5, atol=1e-6), (loss2, ref2)

    print("KERNEL_OK")
</pallas_src>

<mosaic_0001>
module attributes {stable_mosaic.version = 11 : i64} {
  func.func @_hinge_kernel(%arg0: i32, %arg1: memref<16x128xf32, #tpu.memory_space<vmem>>, %arg2: memref<16x128xf32, #tpu.memory_space<vmem>>, %arg3: memref<8x128xf32, #tpu.memory_space<vmem>>) attributes {dimension_semantics = [#tpu.dimension_semantics<arbitrary>], iteration_bounds = array<i64: 1>, scalar_prefetch = 0 : i64, scratch_operands = 0 : i64, tpu.core_type = #tpu.core_type<tc>, window_params = [{transform_indices = @transform_0, window_bounds = array<i64: 16, 128>}, {transform_indices = @transform_1, window_bounds = array<i64: 16, 128>}, {pipeline_mode = #tpu.pipeline_mode<synchronous>, transform_indices = @transform_2, window_bounds = array<i64: 8, 128>}]} {
    %c0_i32 = arith.constant 0 : i32
    %0 = arith.cmpi eq, %arg0, %c0_i32 : i32
    %1 = arith.extui %0 : i1 to i32
    %c0_i32_0 = arith.constant 0 : i32
    %2 = arith.cmpi ne, %1, %c0_i32_0 : i32
    scf.if %2 {
      %cst_10 = arith.constant 0.000000e+00 : f32
      %15 = vector.broadcast %cst_10 : f32 to vector<8x128xf32>
      %c0_11 = arith.constant 0 : index
      %c0_12 = arith.constant 0 : index
      %16 = vector.load %arg3[%c0_11, %c0_12] : memref<8x128xf32, #tpu.memory_space<vmem>>, vector<8x128xf32>
      tpu.vector_store %arg3[%c0_11, %c0_12], %15 {strides = array<i32>} : memref<8x128xf32, #tpu.memory_space<vmem>>, vector<8x128xf32>,
    } else {
    }
    %c0 = arith.constant 0 : index
    %c0_1 = arith.constant 0 : index
    %3 = vector.load %arg1[%c0, %c0_1] : memref<16x128xf32, #tpu.memory_space<vmem>>, vector<16x128xf32>
    %c0_2 = arith.constant 0 : index
    %c0_3 = arith.constant 0 : index
    %4 = vector.load %arg2[%c0_2, %c0_3] : memref<16x128xf32, #tpu.memory_space<vmem>>, vector<16x128xf32>
    %5 = arith.mulf %3, %4 : vector<16x128xf32>
    %cst = arith.constant 1.000000e+00 : f32
    %6 = vector.broadcast %cst : f32 to vector<16x128xf32>
    %7 = arith.subf %6, %5 : vector<16x128xf32>
    %cst_4 = arith.constant 0.000000e+00 : f32
    %8 = vector.broadcast %cst_4 : f32 to vector<16x128xf32>
    %9 = arith.maximumf %7, %8 : vector<16x128xf32>
    %c0_5 = arith.constant 0 : index
    %c0_6 = arith.constant 0 : index
    %10 = vector.load %arg3[%c0_5, %c0_6] : memref<8x128xf32, #tpu.memory_space<vmem>>, vector<8x128xf32>
    %11 = vector.shape_cast %9 : vector<16x128xf32> to vector<2x8x128xf32>
    %cst_7 = arith.constant dense<0.000000e+00> : vector<8x128xf32>
    %12 = vector.multi_reduction <add>, %11, %cst_7 [0] : vector<2x8x128xf32> to vector<8x128xf32>
    %13 = arith.addf %10, %12 : vector<8x128xf32>
    %c0_8 = arith.constant 0 : index
    %c0_9 = arith.constant 0 : index
    %14 = vector.load %arg3[%c0_8, %c0_9] : memref<8x128xf32, #tpu.memory_space<vmem>>, vector<8x128xf32>
    tpu.vector_store %arg3[%c0_8, %c0_9], %13 {strides = array<i32>} : memref<8x128xf32, #tpu.memory_space<vmem>>, vector<8x128xf32>,
    return
  }
  func.func @transform_0(%arg0: i32) -> (i32, i32) {
    %c0_i32 = arith.constant 0 : i32
    %c0_i32_0 = arith.constant 0 : i32
    return %arg0, %c0_i32 : i32, i32
  }
  func.func @transform_1(%arg0: i32) -> (i32, i32) {
    %c0_i32 = arith.constant 0 : i32
    %c0_i32_0 = arith.constant 0 : i32
    return %arg0, %c0_i32 : i32, i32
  }
  func.func @transform_2(%arg0: i32) -> (i32, i32) {
    %c0_i32 = arith.constant 0 : i32
    %c0_i32_0 = arith.constant 0 : i32
    %c0_i32_1 = arith.constant 0 : i32
    return %c0_i32, %c0_i32_0 : i32, i32
  }
}

</mosaic_0001>

<llo_original>
// kernel: tpu_custom_call.1
$region0: #{tpu_custom_call.1}
  #allocation0 [shape = 'u32[]', space=smem, size = 0x4, offset = 0x4, fixed_abs, tag = 'smem constant byte address 0x4 - core index']
  #allocation1 [shape = 'u32[144,128]{1,0:T(1,128)}', space=vmem, size = 0x12000, scoped, tag = 'internal scratch']
  %s0 = inlined_call_operand.hbm [shape: f32[16,128], index: 0, kind: input, shape index: {}]
  %s1 = inlined_call_operand.hbm [shape: f32[16,128], index: 1, kind: input, shape index: {}]
  %s2 = inlined_call_operand.hbm [shape: f32[8,128], index: 2, kind: output, shape index: {}]
  %s3 = sld [smem:[#allocation0]]
  $region30: #{tpu_custom_call.1} parent=0
    _
  %s5 = ssub.s32 1, %s3
  %s6 = scalar_select 0, %s5, %s3
  $region1: #{tpu_custom_call.1} parent=0
    #allocation2 [shape = 'u8[8192]{0}', space=vmem, size = 0x2000, scoped, tag = 'input window, operand 0, single buffered']
    #allocation3 [shape = 's32[1]{0}', space=sflag, size = 0x4, scoped, tag = 'scoped memory for tpu_custom_call.1']
    #allocation4 [shape = 's32[1]{0}', space=sflag, size = 0x4, scoped, tag = 'scoped memory for tpu_custom_call.1']
    #allocation5 [shape = 'u8[8192]{0}', space=vmem, size = 0x2000, scoped, tag = 'input window, operand 1, single buffered']
    #allocation6 [shape = 's32[1]{0}', space=sflag, size = 0x4, scoped, tag = 'scoped memory for tpu_custom_call.1']
    #allocation7 [shape = 'u8[4096]{0}', space=vmem, size = 0x1000, scoped, tag = 'output window, operand 0, single buffered']
    %7 = vsyncpa [#allocation3], 0
    %8 = vsyncpa [#allocation6], 0
    %9 = vsyncpa [#allocation4], 0
    // Predicated region
    $region2: #{tpu_custom_call.1} parent=1 // pred_check
      _
    $region3: #{tpu_custom_call.1} parent=1 // pred_check_branch
      %11 = sbr.rel (0) target = $region5
    $region4: #{tpu_custom_call.1} parent=1 // pred_region
      %s13 = ssub.s32 256, 256
      %14 = vsyncadd [#allocation3], %s13
      %s15 = sshll.u32 [#allocation2], 4
      %s16 = int_to_ptr.vmem [resolvable:$true] %s15
      %21 = dma.hbm_to_vmem [thread:$0]  %s0, 256, %s16, [#allocation3], 128, 128, 8
    $region5: #{tpu_custom_call.1} parent=1 // pred_fallthru
      _
    // Predicated region
    $region6: #{tpu_custom_call.1} parent=1 // pred_check
      _
    $region7: #{tpu_custom_call.1} parent=1 // pred_check_branch
      %23 = sbr.rel (0) target = $region9
    $region8: #{tpu_custom_call.1} parent=1 // pred_region
      %s25 = ssub.s32 256, 256
      %26 = vsyncadd [#allocation6], %s25
      %s27 = sshll.u32 [#allocation5], 4
      %s28 = int_to_ptr.vmem [resolvable:$true] %s27
      %33 = dma.hbm_to_vmem [thread:$0]  %s1, 256, %s28, [#allocation6], 128, 128, 8
    $region9: #{tpu_custom_call.1} parent=1 // pred_fallthru
      _
    // Predicated region
    $region10: #{tpu_custom_call.1} parent=1 // pred_check
      _
    $region11: #{tpu_custom_call.1} parent=1 // pred_check_branch
      %35 = sbr.rel (0) target = $region13
    $region12: #{tpu_custom_call.1} parent=1 // pred_region
      %36 = dma.done [#allocation3], 256
    $region13: #{tpu_custom_call.1} parent=1 // pred_fallthru
      _
    // Predicated region
    $region14: #{tpu_custom_call.1} parent=1 // pred_check
      _
    $region15: #{tpu_custom_call.1} parent=1 // pred_check_branch
      %38 = sbr.rel (0) target = $region17
    $region16: #{tpu_custom_call.1} parent=1 // pred_region
      %39 = dma.done [#allocation6], 256
    $region17: #{tpu_custom_call.1} parent=1 // pred_fallthru
      _
    %p40 = scmp.eq.s32.totalorder 0, 0
    // Predicated region
    $region18: #{tpu_custom_call.1} parent=1 // pred_check
      %p41 = pneg %p40
    $region19: #{tpu_custom_call.1} parent=1 // pred_check_branch
      %43 = sbr.rel (%p41) target = $region21
    $region20: #{tpu_custom_call.1} parent=1 // pred_region
      %44 = vst [vmem:[#allocation7] sm:$0xff] 0.0
    $region21: #{tpu_custom_call.1} parent=1 // pred_fallthru
      _
    %v45 = vld [vmem:[#allocation2] sm:$0xff]
    %v46 = vld [vmem:[#allocation2 + $0x8] sm:$0xff]
    %v47 = vld [vmem:[#allocation5] sm:$0xff]
    %v48 = vld [vmem:[#allocation5 + $0x8] sm:$0xff]
    %v49 = vmul.f32 %v45, %v47
    %v50 = vmul.f32 %v46, %v48
    %v51 = vsub.f32 1.0, %v49
    %v52 = vsub.f32 1.0, %v50
    %v53 = vmax.f32 %v51, 0.0
    %v54 = vmax.f32 %v52, 0.0
    %v55 = vld [vmem:[#allocation7] sm:$0xff]
    %v56 = vadd.f32 %v53, %v54
    %v57 = vadd.f32 %v55, %v56
    %58 = vst [vmem:[#allocation7] sm:$0xff] %v57
    // Predicated region
    $region22: #{tpu_custom_call.1} parent=1 // pred_check
      _
    $region23: #{tpu_custom_call.1} parent=1 // pred_check_branch
      %60 = sbr.rel (0) target = $region25
    $region24: #{tpu_custom_call.1} parent=1 // pred_region
      %s62 = ssub.s32 128, 128
      %63 = vsyncadd [#allocation4], %s62
      %s65 = sshll.u32 [#allocation7], 4
      %s66 = int_to_ptr.vmem [resolvable:$true] %s65
      %68 = dma.vmem_to_hbm [thread:$0]  %s66, 128, %s2, [#allocation4]
    $region25: #{tpu_custom_call.1} parent=1 // pred_fallthru
      _
    // Predicated region
    $region26: #{tpu_custom_call.1} parent=1 // pred_check
      _
    $region27: #{tpu_custom_call.1} parent=1 // pred_check_branch
      %70 = sbr.rel (0) target = $region29
    $region28: #{tpu_custom_call.1} parent=1 // pred_region
      %71 = dma.done [#allocation4], 128
    $region29: #{tpu_custom_call.1} parent=1 // pred_fallthru
      _
    %72 = vsyncpa [#allocation3], 1
    %73 = vsyncpa [#allocation6], 1
    %74 = vsyncpa [#allocation4], 1

</llo_original>
